<compile_context>
chip_gen: v5e
topology: v5e:2x2
jax: 0.10.0
libtpu: 0.0.40
codegen_flags: <defaults>
</compile_context>

<pallas_src>
import jax
import jax.numpy as jnp
from jax.experimental import pallas as pl
from jax.experimental.pallas import tpu as pltpu

O_CH = 5      # output channels, fixed by the wrapper's reshape
O_PAD = 8     # padded to a full sublane group for aligned (8,128) tiles
KH = KW = 3   # synthetic UNet = one 3x3 conv (stand-in for the injected `model`)
N_TTA = 4     # identity, flip-H, flip-W, flip-both


# ---------------------------------------------------------------------------
# Fused Pallas kernel: one matmul per batch element = conv for all 4 TTA views,
# then in-register TTA sum + bias.  Grid = (B,), no scratch, no pl.when.
# ---------------------------------------------------------------------------
def _tta_conv_kernel(p_ref, w_ref, b_ref, o_ref):
    # p_ref : (1, 9*C, HW)        im2col slab of the ORIGINAL image
    # w_ref : (4*O_PAD, 9*C)      stacked pre-flipped weights, already *0.25, VMEM-resident
    # b_ref : (O_PAD, 1)          bias (zero-padded rows 5..7)
    # o_ref : (1, O_PAD, HW)      output block
    y = jnp.dot(w_ref[...], p_ref[0], preferred_element_type=jnp.float32)  # (32, HW)
    # Sum the 4 TTA groups of O_PAD rows (vreg-aligned static slices, 3 VPU adds).
    acc = (y[0 * O_PAD:1 * O_PAD] + y[1 * O_PAD:2 * O_PAD]
           + y[2 * O_PAD:3 * O_PAD] + y[3 * O_PAD:4 * O_PAD])
    o_ref[0] = (acc + b_ref[...]).astype(o_ref.dtype)


# ---------------------------------------------------------------------------
# Full UNet_Wrapper.forward (add_noise=False, repeats=1)
# ---------------------------------------------------------------------------
def unet_wrapper_forward(x, conv_weight, conv_bias):
    """x: (B, C, H, W) NCHW f32 -> (B, 5, H, W) f32."""
    B, C, H, W = x.shape
    HW = H * W
    KC = KH * KW * C

    # --- wrapper-side layout prep (tiny, done once by XLA) -------------------
    # im2col: patches[b, (dh*3+dw)*C + c, i*W + j] = x_pad[b, c, i+dh, j+dw]
    x_pad = jnp.pad(x, ((0, 0), (0, 0), (1, 1), (1, 1)))
    taps = [x_pad[:, :, dh:dh + H, dw:dw + W].reshape(B, C, HW)
            for dh in range(KH) for dw in range(KW)]
    patches = jnp.concatenate(taps, axis=1)                      # (B, 9*C, HW)

    # 4 pre-flipped weight stacks: flip(conv(flip(x), w)) == conv(x, flip_k(w)).
    # The TTA mean (1/4) is folded in here so the kernel epilogue is sum + bias.
    w_stack = 0.25 * jnp.stack(
        [conv_weight,
         jnp.flip(conv_weight, axis=2),                          # TTA flip-H
         jnp.flip(conv_weight, axis=3),                          # TTA flip-W
         jnp.flip(conv_weight, axis=(2, 3))], axis=0)            # TTA flip-both
    # column order matches im2col: index = (dh*3+dw)*C + c
    w_mats = jnp.transpose(w_stack, (0, 1, 3, 4, 2)).reshape(N_TTA, O_CH, KC)
    w_mats = jnp.pad(w_mats, ((0, 0), (0, O_PAD - O_CH), (0, 0)))   # (4, 8, 9*C)
    w_lhs = w_mats.reshape(N_TTA * O_PAD, KC)                       # (32, 9*C)
    b_col = jnp.pad(conv_bias, (0, O_PAD - O_CH)).reshape(O_PAD, 1)

    # --- single fused pallas_call, grid = (B,) --------------------------------
    out = pl.pallas_call(
        _tta_conv_kernel,
        out_shape=jax.ShapeDtypeStruct((B, O_PAD, HW), jnp.float32),
        grid_spec=pltpu.PrefetchScalarGridSpec(
            num_scalar_prefetch=0,
            grid=(B,),
            in_specs=[
                pl.BlockSpec((1, KC, HW), lambda b: (b, 0, 0)),          # per-batch slab
                pl.BlockSpec((N_TTA * O_PAD, KC), lambda b: (0, 0)),     # invariant weights
                pl.BlockSpec((O_PAD, 1), lambda b: (0, 0)),              # invariant bias
            ],
            out_specs=pl.BlockSpec((1, O_PAD, HW), lambda b: (b, 0, 0)),
        ),
        compiler_params=pltpu.CompilerParams(
            dimension_semantics=("parallel",)),                  # v7x: 2 TCs share batch
    )(patches, w_lhs, b_col)

    return out[:, :O_CH].reshape(B, O_CH, H, W)


# ---------------------------------------------------------------------------
# Pure-JAX reference (mirrors the PyTorch wrapper literally: flip data, conv,
# un-flip, mean) for correctness checking.
# ---------------------------------------------------------------------------
def unet_wrapper_forward_ref(x, conv_weight, conv_bias):
    B, C, H, W = x.shape
    x_aug = jnp.stack(
        [x, jnp.flip(x, -2), jnp.flip(x, -1), jnp.flip(x, (-2, -1))], axis=0)
    xf = x_aug.reshape(4 * B, C, H, W)
    y = jax.lax.conv_general_dilated(
        xf, conv_weight, window_strides=(1, 1), padding="SAME",
        dimension_numbers=("NCHW", "OIHW", "NCHW"))
    y = y + conv_bias[None, :, None, None]
    y = y.reshape(4, B, O_CH, H, W)
    y = jnp.stack(
        [y[0], jnp.flip(y[1], -2), jnp.flip(y[2], -1), jnp.flip(y[3], (-2, -1))],
        axis=0)
    return jnp.mean(y, axis=0)


if __name__ == "__main__":
    key = jax.random.PRNGKey(0)
    kx, kw, kb = jax.random.split(key, 3)

    B, C, H, W = 2, 4, 16, 16
    x = jax.random.uniform(kx, (B, C, H, W), dtype=jnp.float32)
    conv_weight = 0.1 * jax.random.normal(kw, (O_CH, C, KH, KW), dtype=jnp.float32)
    conv_bias = 0.05 * jax.random.normal(kb, (O_CH,), dtype=jnp.float32)

    fwd = jax.jit(unet_wrapper_forward)
    out = jax.block_until_ready(fwd(x, conv_weight, conv_bias))
    ref = jax.block_until_ready(unet_wrapper_forward_ref(x, conv_weight, conv_bias))

    assert out.shape == (B, O_CH, H, W), out.shape
    assert jnp.allclose(out, ref, atol=1e-4, rtol=1e-4), \
        float(jnp.max(jnp.abs(out - ref)))
    print("KERNEL_OK")
</pallas_src>

<mosaic_0001>
module attributes {stable_mosaic.version = 11 : i64} {
  func.func @_tta_conv_kernel(%arg0: i32, %arg1: memref<1x36x256xf32, #tpu.memory_space<vmem>>, %arg2: memref<32x36xf32, #tpu.memory_space<vmem>>, %arg3: memref<8x1xf32, #tpu.memory_space<vmem>>, %arg4: memref<1x8x256xf32, #tpu.memory_space<vmem>>) attributes {dimension_semantics = [#tpu.dimension_semantics<parallel>], iteration_bounds = array<i64: 2>, scalar_prefetch = 0 : i64, scratch_operands = 0 : i64, tpu.core_type = #tpu.core_type<tc>, window_params = [{transform_indices = @transform_0, window_bounds = array<i64: 1, 36, 256>}, {pipeline_mode = #tpu.pipeline_mode<synchronous>, transform_indices = @transform_1, window_bounds = array<i64: 32, 36>}, {pipeline_mode = #tpu.pipeline_mode<synchronous>, transform_indices = @transform_2, window_bounds = array<i64: 8, 1>}, {transform_indices = @transform_3, window_bounds = array<i64: 1, 8, 256>}]} {
    %c0 = arith.constant 0 : index
    %c0_0 = arith.constant 0 : index
    %0 = vector.load %arg2[%c0, %c0_0] : memref<32x36xf32, #tpu.memory_space<vmem>>, vector<32x36xf32>
    %c0_1 = arith.constant 0 : index
    %c0_2 = arith.constant 0 : index
    %c0_3 = arith.constant 0 : index
    %1 = vector.load %arg1[%c0_1, %c0_2, %c0_3] : memref<1x36x256xf32, #tpu.memory_space<vmem>>, vector<1x36x256xf32>
    %2 = vector.shape_cast %1 : vector<1x36x256xf32> to vector<36x256xf32>
    %cst = arith.constant dense<0.000000e+00> : vector<32x256xf32>
    %3 = tpu.matmul %0, %2, %cst {dimension_numbers = #tpu.dot_dimension_numbers<[1], [0], [0], [1], [0, 0, 1, 1], [], []>} : vector<32x36xf32>, vector<36x256xf32>, vector<32x256xf32> -> vector<32x256xf32>
    %4 = vector.extract_strided_slice %3 {offsets = [0, 0], sizes = [8, 256], strides = [1, 1]} : vector<32x256xf32> to vector<8x256xf32>
    %5 = vector.extract_strided_slice %3 {offsets = [8, 0], sizes = [8, 256], strides = [1, 1]} : vector<32x256xf32> to vector<8x256xf32>
    %6 = arith.addf %4, %5 : vector<8x256xf32>
    %7 = vector.extract_strided_slice %3 {offsets = [16, 0], sizes = [8, 256], strides = [1, 1]} : vector<32x256xf32> to vector<8x256xf32>
    %8 = arith.addf %6, %7 : vector<8x256xf32>
    %9 = vector.extract_strided_slice %3 {offsets = [24, 0], sizes = [8, 256], strides = [1, 1]} : vector<32x256xf32> to vector<8x256xf32>
    %10 = arith.addf %8, %9 : vector<8x256xf32>
    %c0_4 = arith.constant 0 : index
    %c0_5 = arith.constant 0 : index
    %11 = vector.load %arg3[%c0_4, %c0_5] : memref<8x1xf32, #tpu.memory_space<vmem>>, vector<8x1xf32>
    %12 = vector.broadcast %11 : vector<8x1xf32> to vector<8x256xf32>
    %13 = arith.addf %10, %12 : vector<8x256xf32>
    %c0_6 = arith.constant 0 : index
    %c0_7 = arith.constant 0 : index
    %c0_8 = arith.constant 0 : index
    %14 = vector.load %arg4[%c0_6, %c0_7, %c0_8] : memref<1x8x256xf32, #tpu.memory_space<vmem>>, vector<1x8x256xf32>
    %15 = vector.shape_cast %14 : vector<1x8x256xf32> to vector<8x256xf32>
    %16 = vector.shape_cast %13 : vector<8x256xf32> to vector<1x8x256xf32>
    tpu.vector_store %arg4[%c0_6, %c0_7, %c0_8], %16 {strides = array<i32>} : memref<1x8x256xf32, #tpu.memory_space<vmem>>, vector<1x8x256xf32>,
    return
  }
  func.func @transform_0(%arg0: i32) -> (i32, i32, i32) {
    %c0_i32 = arith.constant 0 : i32
    %c0_i32_0 = arith.constant 0 : i32
    %c0_i32_1 = arith.constant 0 : i32
    return %arg0, %c0_i32, %c0_i32_0 : i32, i32, i32
  }
  func.func @transform_1(%arg0: i32) -> (i32, i32) {
    %c0_i32 = arith.constant 0 : i32
    %c0_i32_0 = arith.constant 0 : i32
    %c0_i32_1 = arith.constant 0 : i32
    return %c0_i32, %c0_i32_0 : i32, i32
  }
  func.func @transform_2(%arg0: i32) -> (i32, i32) {
    %c0_i32 = arith.constant 0 : i32
    %c0_i32_0 = arith.constant 0 : i32
    %c0_i32_1 = arith.constant 0 : i32
    return %c0_i32, %c0_i32_0 : i32, i32
  }
  func.func @transform_3(%arg0: i32) -> (i32, i32, i32) {
    %c0_i32 = arith.constant 0 : i32
    %c0_i32_0 = arith.constant 0 : i32
    %c0_i32_1 = arith.constant 0 : i32
    return %arg0, %c0_i32, %c0_i32_0 : i32, i32, i32
  }
}

</mosaic_0001>

<llo_original>
// kernel: unet_wrapper_forward.1
$region0: #{unet_wrapper_forward.1}
  #allocation0 [shape = 'u32[]', space=smem, size = 0x4, offset = 0x4, fixed_abs, tag = 'smem constant byte address 0x4 - core index']
  #allocation1 [shape = 'u32[72,128]{1,0:T(1,128)}', space=vmem, size = 0x9000, scoped, tag = 'internal scratch']
  %s0 = inlined_call_operand.vmem [shape: f32[2,36,256], index: 0, kind: input, shape index: {}]
  %s1 = inlined_call_operand.vmem [shape: f32[32,36], index: 1, kind: input, shape index: {}]
  %s2 = inlined_call_operand.vmem [shape: f32[8,1], index: 2, kind: input, shape index: {}]
  %s3 = inlined_call_operand.vmem [shape: f32[2,8,256], index: 3, kind: output, shape index: {}]
  %s4 = sld [smem:[#allocation0]]
  $region45: #{unet_wrapper_forward.1} parent=0
    _
  %s6 = ssub.s32 1, %s4
  %s7 = scalar_select 0, %s6, %s4
  loop: start=0, step=1, limit=4
  $region2: #{unet_wrapper_forward.1} parent=0 // loop_pre_header
    _
  $region3: #{unet_wrapper_forward.1} parent=0 // loop_header
    %s9 = sphi 0, %s13
    %p10 = scmp.ge.s32.totalorder %s9, 4
    %s19 = sphi 0, %s21
    %s22 = sphi 0, %s19
    %s23 = sphi 0, %s22
    %s39 = sphi 0, %s23
    %s43 = sphi 0, %s43
    %s45 = sphi 0, %s43
    %s46 = sphi 0, %s45
    %s60 = sphi 0, %s46
    %s64 = sphi 0, %s64
    %s66 = sphi 0, %s64
    %s67 = sphi 0, %s66
    %s81 = sphi 0, %s67
    %s87 = sphi 0, %s89
    %s90 = sphi 0, %s87
    %s91 = sphi 0, %s90
    %s107 = sphi 0, %s91
  $region4: #{unet_wrapper_forward.1} parent=0 // loop_header_branch
    %12 = sbr.rel (%p10) target = $region8
  $region5: #{unet_wrapper_forward.1} parent=0 // loop_body
    %s14 = ssub.s32 %s9, 1
    %s15 = ssub.s32 %s9, 2
    %s16 = sadd.s32 %s9, 1
    %s17 = ssub.s32 %s9, %s16
    %p18 = scmp.eq.s32.totalorder %s17, 0
    %s20 = sadd.s32 %s19, 1
    %s21 = scalar_select %p18, %s19, %s20
    %p24 = pneg %p18
    %p25 = scmp.eq.s32.totalorder %s9, 1
    %p26 = por %p24, %p25
    %p27 = scmp.ne.s32.totalorder %s19, %s22
    %p28 = scmp.eq.s32.totalorder %s9, 0
    %p29 = por %p27, %p28
    %p30 = scmp.ne.s32.totalorder %s19, %s22
    %p31 = scmp.eq.s32.totalorder %s14, 1
    %p32 = por %p30, %p31
    %p33 = scmp.ne.s32.totalorder %s22, %s23
    %p34 = scmp.eq.s32.totalorder %s14, 0
    %p35 = por %p33, %p34
    %p36 = scmp.ne.s32.totalorder %s22, %s23
    %p37 = scmp.eq.s32.totalorder %s15, 1
    %p38 = por %p36, %p37
    %p40 = scmp.ne.s32.totalorder %s23, %s39
    %p41 = scmp.eq.s32.totalorder %s15, 0
    %p42 = por %p40, %p41
    %s44 = sadd.s32 %s43, 1
    %p47 = scmp.eq.s32.totalorder %s9, 1
    %p48 = scmp.ne.s32.totalorder %s43, %s45
    %p49 = scmp.eq.s32.totalorder %s9, 0
    %p50 = por %p48, %p49
    %p51 = scmp.ne.s32.totalorder %s43, %s45
    %p52 = scmp.eq.s32.totalorder %s14, 1
    %p53 = por %p51, %p52
    %p54 = scmp.ne.s32.totalorder %s45, %s46
    %p55 = scmp.eq.s32.totalorder %s14, 0
    %p56 = por %p54, %p55
    %p57 = scmp.ne.s32.totalorder %s45, %s46
    %p58 = scmp.eq.s32.totalorder %s15, 1
    %p59 = por %p57, %p58
    %p61 = scmp.ne.s32.totalorder %s46, %s60
    %p62 = scmp.eq.s32.totalorder %s15, 0
    %p63 = por %p61, %p62
    %s65 = sadd.s32 %s64, 1
    %p68 = scmp.eq.s32.totalorder %s9, 1
    %p69 = scmp.ne.s32.totalorder %s64, %s66
    %p70 = scmp.eq.s32.totalorder %s9, 0
    %p71 = por %p69, %p70
    %p72 = scmp.ne.s32.totalorder %s64, %s66
    %p73 = scmp.eq.s32.totalorder %s14, 1
    %p74 = por %p72, %p73
    %p75 = scmp.ne.s32.totalorder %s66, %s67
    %p76 = scmp.eq.s32.totalorder %s14, 0
    %p77 = por %p75, %p76
    %p78 = scmp.ne.s32.totalorder %s66, %s67
    %p79 = scmp.eq.s32.totalorder %s15, 1
    %p80 = por %p78, %p79
    %p82 = scmp.ne.s32.totalorder %s67, %s81
    %p83 = scmp.eq.s32.totalorder %s15, 0
    %p84 = por %p82, %p83
    %s85 = ssub.s32 %s9, %s16
    %p86 = scmp.eq.s32.totalorder %s85, 0
    %s88 = sadd.s32 %s87, 1
    %s89 = scalar_select %p86, %s87, %s88
    %p92 = pneg %p86
    %p93 = scmp.eq.s32.totalorder %s9, 1
    %p94 = por %p92, %p93
    %p95 = scmp.ne.s32.totalorder %s87, %s90
    %p96 = scmp.eq.s32.totalorder %s9, 0
    %p97 = por %p95, %p96
    %p98 = scmp.ne.s32.totalorder %s87, %s90
    %p99 = scmp.eq.s32.totalorder %s14, 1
    %p100 = por %p98, %p99
    %p101 = scmp.ne.s32.totalorder %s90, %s91
    %p102 = scmp.eq.s32.totalorder %s14, 0
    %p103 = por %p101, %p102
    %p104 = scmp.ne.s32.totalorder %s90, %s91
    %p105 = scmp.eq.s32.totalorder %s15, 1
    %p106 = por %p104, %p105
    %p108 = scmp.ne.s32.totalorder %s91, %s107
    %p109 = scmp.eq.s32.totalorder %s15, 0
    %p110 = por %p108, %p109
    %p111 = scmp.le.s32.totalorder 1, %s9
    %p112 = scmp.lt.s32.totalorder %s9, 3
    %p113 = pnand %p111, %p112
    %p114 = pneg %p113
    // Predicated region
    $region9: #{unet_wrapper_forward.1} parent=5 // pred_check
      _
    $region10: #{unet_wrapper_forward.1} parent=5 // pred_check_branch
      %116 = sbr.rel (%p113) target = $region12
    $region11: #{unet_wrapper_forward.1} parent=5 // pred_region
      %s117 = ssub.s32 %s9, 1
      // Predicated region
      $region13: #{unet_wrapper_forward.1} parent=11 // pred_check
        %p118 = pneg %p56
      $region14: #{unet_wrapper_forward.1} parent=11 // pred_check_branch
        %120 = sbr.rel (%p118) target = $region16
      $region15: #{unet_wrapper_forward.1} parent=11 // pred_region
        _
      $region16: #{unet_wrapper_forward.1} parent=11 // pred_fallthru
        _
      // Predicated region
      $region17: #{unet_wrapper_forward.1} parent=11 // pred_check
        %p121 = pneg %p77
      $region18: #{unet_wrapper_forward.1} parent=11 // pred_check_branch
        %123 = sbr.rel (%p121) target = $region20
      $region19: #{unet_wrapper_forward.1} parent=11 // pred_region
        _
      $region20: #{unet_wrapper_forward.1} parent=11 // pred_fallthru
        _
    $region12: #{unet_wrapper_forward.1} parent=5 // pred_fallthru
      _
    %p124 = scmp.lt.s32.totalorder %s9, 2
    // Predicated region
    $region21: #{unet_wrapper_forward.1} parent=5 // pred_check
      %p125 = pneg %p124
    $region22: #{unet_wrapper_forward.1} parent=5 // pred_check_branch
      %127 = sbr.rel (%p125) target = $region24
    $region23: #{unet_wrapper_forward.1} parent=5 // pred_region
      // Predicated region
      $region25: #{unet_wrapper_forward.1} parent=23 // pred_check
        %p128 = pneg %p29
      $region26: #{unet_wrapper_forward.1} parent=23 // pred_check_branch
        %130 = sbr.rel (%p128) target = $region28
      $region27: #{unet_wrapper_forward.1} parent=23 // pred_region
        %p131 = scmp.lt.s32.totalorder %s9, 1
        %s132 = scalar_select %p131, %s9, 1
        %s133 = smul.addr %s132, 10
        %s134 = smul.addr %s133, 8
        %s135 = scalar_lea.vmem %s0, %s134
      $region28: #{unet_wrapper_forward.1} parent=23 // pred_fallthru
        _
    $region24: #{unet_wrapper_forward.1} parent=5 // pred_fallthru
      _
    %p136 = scmp.le.s32.totalorder 1, %s9
    %p137 = scmp.lt.s32.totalorder %s9, 3
    %p138 = pnand %p136, %p137
    %p139 = pneg %p138
    // Predicated region
    $region29: #{unet_wrapper_forward.1} parent=5 // pred_check
      _
    $region30: #{unet_wrapper_forward.1} parent=5 // pred_check_branch
      %141 = sbr.rel (%p138) target = $region32
    $region31: #{unet_wrapper_forward.1} parent=5 // pred_region
      %s142 = ssub.s32 %s9, 1
      %p143 = scmp.lt.s32.totalorder %s14, 1
      %s144 = scalar_select %p143, %s14, 1
      %s145 = smul.addr %s144, 10
      %s146 = smul.addr %s145, 8
      %s147 = scalar_lea.vmem %s0, %s146
      %p148 = pneg %p35
      %p149 = pneg %p32
      %p150 = pneg %p56
      %p151 = pneg %p53
      %p152 = pneg %p77
      %p153 = pneg %p74
      %p154 = pneg %p103
      %p155 = pneg %p100
      %p156 = scmp.lt.s32.totalorder %s14, 1
      %s157 = scalar_select %p156, %s14, 1
      %s158 = smul.addr %s157, 2
      %s159 = smul.addr %s158, 8
      %s160 = scalar_lea.vmem %s3, %s159
      %p161 = scmp.lt.s32.totalorder %s14, 1
      %s162 = scalar_select %p161, %s14, 1
      %s163 = smul.addr %s162, 10
      %s164 = smul.addr %s163, 8
      %s165 = scalar_lea.vmem %s0, %s164
      %p166 = scmp.lt.s32.totalorder %s14, 1
      %s167 = scalar_select %p166, %s14, 1
      %s168 = smul.addr %s167, 2
      %s169 = smul.addr %s168, 8
      %s170 = scalar_lea.vmem %s3, %s169
      %v171 = vld [vmem:[%s1] sm:$0xff]
      %v172 = vld [vmem:[%s1 + $0x8] sm:$0xff]
      %v173 = vld [vmem:[%s1 + $0x10] sm:$0xff]
      %v174 = vld [vmem:[%s1 + $0x18] sm:$0xff]
      %v175 = vld [vmem:[%s165] sm:$0xff]
      %v176 = vld [vmem:[%s165 + $0x8] sm:$0xff]
      %v177 = vld [vmem:[%s165 + $0x10] sm:$0xff]
      %v178 = vld [vmem:[%s165 + $0x18] sm:$0xff]
      %v179 = vld [vmem:[%s165 + $0x20] sm:$0xff]
      %v180 = vld [vmem:[%s165 + $0x28] sm:$0xff]
      %v181 = vld [vmem:[%s165 + $0x30] sm:$0xff]
      %v182 = vld [vmem:[%s165 + $0x38] sm:$0xff]
      %v183 = vld [vmem:[%s165 + $0x40] sm:$0xf]
      %v184 = vld [vmem:[%s165 + $0x48] sm:$0xf]
      %vm185 = vcmask 293888
      %v187 = vsel %vm185, %v171, 0
      %v190 = vsel %vm185, %v172, 0
      %v193 = vsel %vm185, %v173, 0
      %v196 = vsel %vm185, %v174, 0
      %vm198 = vcmask 1043456
      %v200 = vsel %vm198, %v183, 0
      %v203 = vsel %vm198, %v184, 0
      %205 = vmatpush.msra.mxu0 0.0
      %206 = vmatpush.msra.mxu0 0.0
      %207 = vmatpush.msra.mxu0 0.0
      %208 = vmatpush.msra.mxu0 0.0
      %209 = vmatpush.msra.mxu0 0.0
      %210 = vmatpush.msra.mxu0 0.0
      %211 = vmatpush.msra.mxu0 0.0
      %212 = vmatpush.msra.mxu0 0.0
      %213 = vmatpush.msra.mxu0 0.0
      %214 = vmatpush.msra.mxu0 0.0
      %215 = vmatpush.msra.mxu0 0.0
      %216 = vmatpush.msra.mxu0 %v200
      %217 = vmatpush.msra.mxu0 %v181
      %218 = vmatpush.msra.mxu0 %v179
      %219 = vmatpush.msra.mxu0 %v177
      %220 = vmatpush.msra.mxu0 %v175
      %221 = vmatmul.f32.gmra.mxu0 %v187
      %v222 = vpop.f32.mrf.mxu0
      %v223 = vadd.f32 0.0, %v222
      %224 = vmatmul.f32.gmra.mxu0 %v190
      %v225 = vpop.f32.mrf.mxu0
      %v226 = vadd.f32 0.0, %v225
      %227 = vmatmul.f32.gmra.mxu0 %v193
      %v228 = vpop.f32.mrf.mxu0
      %v229 = vadd.f32 0.0, %v228
      %230 = vmatmul.f32.gmra.mxu0 %v196
      %v231 = vpop.f32.mrf.mxu0
      %v232 = vadd.f32 0.0, %v231
      %233 = vdwg.mxu0
      %234 = vmatpush.msra.mxu0 0.0
      %235 = vmatpush.msra.mxu0 0.0
      %236 = vmatpush.msra.mxu0 0.0
      %237 = vmatpush.msra.mxu0 0.0
      %238 = vmatpush.msra.mxu0 0.0
      %239 = vmatpush.msra.mxu0 0.0
      %240 = vmatpush.msra.mxu0 0.0
      %241 = vmatpush.msra.mxu0 0.0
      %242 = vmatpush.msra.mxu0 0.0
      %243 = vmatpush.msra.mxu0 0.0
      %244 = vmatpush.msra.mxu0 0.0
      %245 = vmatpush.msra.mxu0 %v203
      %246 = vmatpush.msra.mxu0 %v182
      %247 = vmatpush.msra.mxu0 %v180
      %248 = vmatpush.msra.mxu0 %v178
      %249 = vmatpush.msra.mxu0 %v176
      %250 = vmatmul.f32.gmra.mxu0 %v187
      %v251 = vpop.f32.mrf.mxu0
      %v252 = vadd.f32 0.0, %v251
      %253 = vmatmul.f32.gmra.mxu0 %v190
      %v254 = vpop.f32.mrf.mxu0
      %v255 = vadd.f32 0.0, %v254
      %256 = vmatmul.f32.gmra.mxu0 %v193
      %v257 = vpop.f32.mrf.mxu0
      %v258 = vadd.f32 0.0, %v257
      %259 = vmatmul.f32.gmra.mxu0 %v196
      %v260 = vpop.f32.mrf.mxu0
      %v261 = vadd.f32 0.0, %v260
      %262 = vdwg.mxu0
      %v263 = vadd.f32 %v223, %v226
      %v264 = vadd.f32 %v252, %v255
      %v265 = vadd.f32 %v263, %v229
      %v266 = vadd.f32 %v264, %v258
      %v267 = vadd.f32 %v265, %v232
      %v268 = vadd.f32 %v266, %v261
      %v269 = vld [vmem:[%s2] sm:$0xff]
      %271 = vset.pattern.permute.xlu0 0
      %272 = vperm.xlu0 %271, %v269
      %v273 = vpop.permute.xlu0 %272
      %v275 = vadd.f32 %v267, %v273
      %v276 = vadd.f32 %v268, %v273
      %277 = vst [vmem:[%s170] sm:$0xff] %v275
      %278 = vst [vmem:[%s170 + $0x8] sm:$0xff] %v276
      %p279 = scmp.lt.s32.totalorder %s14, 1
      %s280 = scalar_select %p279, %s14, 1
      %s281 = smul.addr %s280, 2
      %s282 = smul.addr %s281, 8
      %s283 = scalar_lea.vmem %s3, %s282
      // Predicated region
      $region33: #{unet_wrapper_forward.1} parent=31 // pred_check
        %p284 = pneg %p100
      $region34: #{unet_wrapper_forward.1} parent=31 // pred_check_branch
        %286 = sbr.rel (%p284) target = $region36
      $region35: #{unet_wrapper_forward.1} parent=31 // pred_region
        _
      $region36: #{unet_wrapper_forward.1} parent=31 // pred_fallthru
        _
    $region32: #{unet_wrapper_forward.1} parent=5 // pred_fallthru
      _
    %p287 = scmp.le.s32.totalorder 2, %s9
    // Predicated region
    $region37: #{unet_wrapper_forward.1} parent=5 // pred_check
      %p288 = pneg %p287
    $region38: #{unet_wrapper_forward.1} parent=5 // pred_check_branch
      %290 = sbr.rel (%p288) target = $region40
    $region39: #{unet_wrapper_forward.1} parent=5 // pred_region
      %s291 = ssub.s32 %s9, 2
      // Predicated region
      $region41: #{unet_wrapper_forward.1} parent=39 // pred_check
        %p292 = pneg %p106
      $region42: #{unet_wrapper_forward.1} parent=39 // pred_check_branch
        %294 = sbr.rel (%p292) target = $region44
      $region43: #{unet_wrapper_forward.1} parent=39 // pred_region
        %p295 = scmp.lt.s32.totalorder %s15, 1
        %s296 = scalar_select %p295, %s15, 1
        %s297 = smul.addr %s296, 2
        %s298 = smul.addr %s297, 8
        %s299 = scalar_lea.vmem %s3, %s298
      $region44: #{unet_wrapper_forward.1} parent=39 // pred_fallthru
        _
    $region40: #{unet_wrapper_forward.1} parent=5 // pred_fallthru
      _
  $region6: #{unet_wrapper_forward.1} parent=0 // loop_footer
    %s13 = sadd.s32 1, %s9
  $region7: #{unet_wrapper_forward.1} parent=0 // loop_footer_branch
    %8 = sbr.rel target = $region3
  $region8: #{unet_wrapper_forward.1} parent=0 // loop_exit
    _

</llo_original>
